<compile_context>
chip_gen: v5e
topology: v5e:2x2
jax: 0.10.0
libtpu: 0.0.40
codegen_flags: <defaults>
</compile_context>

<pallas_src>
import functools
import math

import jax
import jax.numpy as jnp
from jax.experimental import pallas as pl
from jax.experimental.pallas import tpu as pltpu

_MIB = 1024 * 1024


def _round_up(x, m):
    return ((x + m - 1) // m) * m


def _vmem_capacity_bytes():
    """Physical VMEM of the current chip; conservative fallback if unknown."""
    try:
        cap = getattr(pltpu.get_tpu_info(), "vmem_capacity_bytes", None)
        if cap:
            return int(cap)
    except Exception:
        pass
    return 64 * _MIB  # v7x per-TensorCore VMEM (smallest of v5e/v6e/v7x)


def _tile_vmem_bytes(tm, th, C, H, x_bytes, w_bytes, out_bytes, use_scratch, n_wbuf):
    """Rough VMEM footprint of one grid step, including pipelining buffers."""
    need = 2 * tm * C * x_bytes            # x row tile (double-buffered)
    need += 2 * tm * C * out_bytes         # output row tile (double-buffered)
    if use_scratch:
        need += tm * C * 4                 # f32 accumulator scratch
    need += n_wbuf * 2 * C * th * w_bytes  # W1 (C, th) + W2 (th, C) tiles
    need += n_wbuf * 8 * (th + C) * 4      # (1, th)/(1, C) biases, sublane-padded
    need += 2 * tm * th * 4                # live f32 GELU intermediates
    return need


def ffn_kernel(x_ref, w1_ref, b1_ref, w2_ref, b2_ref, o_ref, *scratch):
    """One (tm rows) x (th hidden) step of GELU(x @ W1 + b1) @ W2 + b2."""
    # When the output is f32 we accumulate directly into the (revisited) output
    # block and skip the scratch accumulator entirely.
    acc_ref = scratch[0] if scratch else o_ref
    h_idx = pl.program_id(1)

    @pl.when(h_idx == 0)
    def _():
        # Fold the c_proj bias into the accumulator init (added exactly once).
        acc_ref[...] = jnp.broadcast_to(
            b2_ref[...].astype(jnp.float32), acc_ref.shape)

    # c_fc slice: x @ W1[:, h-tile] + b1[h-tile]  (f32 accumulation on the MXU).
    h = jnp.dot(x_ref[...], w1_ref[...], preferred_element_type=jnp.float32)
    h = h + b1_ref[...].astype(jnp.float32)
    # nn.GELU() default is the exact (erf) formulation (module spec), kept as-is.
    h = 0.5 * h * (1.0 + jax.lax.erf(h * (1.0 / math.sqrt(2.0))))
    # c_proj partial product, accumulated over the hidden-dim tiles.
    acc_ref[...] += jnp.dot(h.astype(w2_ref.dtype), w2_ref[...],
                            preferred_element_type=jnp.float32)

    if scratch:
        @pl.when(h_idx == pl.num_programs(1) - 1)
        def _():
            o_ref[...] = acc_ref[...].astype(o_ref.dtype)


@functools.partial(
    jax.jit,
    static_argnames=("tm", "th", "out_dtype", "single_buffer", "vmem_cap"))
def _ffn_pallas(x2d, w1, b1_2d, w2, b2_2d, *, tm, th, out_dtype, single_buffer,
                vmem_cap):
    M, C = x2d.shape
    H = w1.shape[1]
    n_h = H // th
    out_dtype = jnp.dtype(out_dtype)
    # f32 outputs: accumulate in-place in the output block (saves tm*C*4 VMEM).
    use_scratch = out_dtype != jnp.dtype(jnp.float32)

    can_buffer = single_buffer and hasattr(pl, "Buffered")
    # Inputs with a constant index_map are only fetched once; single-buffer them
    # so they don't burn a second VMEM copy.
    w_resident = can_buffer and n_h == 1
    w_kwargs = dict(pipeline_mode=pl.Buffered(1)) if w_resident else {}
    b2_kwargs = dict(pipeline_mode=pl.Buffered(1)) if can_buffer else {}

    in_specs = [
        pl.BlockSpec((tm, C), lambda i, h: (i, 0)),                  # x rows
        pl.BlockSpec((C, th), lambda i, h: (0, h), **w_kwargs),      # W1 tile
        pl.BlockSpec((1, th), lambda i, h: (0, h), **w_kwargs),      # b1 tile
        pl.BlockSpec((th, C), lambda i, h: (h, 0), **w_kwargs),      # W2 tile
        pl.BlockSpec((1, C), lambda i, h: (0, 0), **b2_kwargs),      # b2
    ]
    out_spec = pl.BlockSpec((tm, C), lambda i, h: (i, 0))

    x_bytes = x2d.dtype.itemsize
    w_bytes = w1.dtype.itemsize
    out_bytes = out_dtype.itemsize
    n_wbuf = 1 if w_resident else 2
    need = _tile_vmem_bytes(tm, th, C, H, x_bytes, w_bytes, out_bytes,
                            use_scratch, n_wbuf)
    # Explicit VMEM budget with headroom, capped at ~90% of this chip's VMEM
    # (so it is valid on v7x's 64 MiB as well as v5e/v6e's 128 MiB).
    vmem_limit = int(min(max(int(1.25 * need), 32 * _MIB), int(0.9 * vmem_cap)))

    n_row = M // tm
    # Weight HBM traffic: loaded once when fully resident, re-streamed once per
    # row tile when h-tiled.
    w_stream = 2 * C * H * w_bytes * (1 if n_h == 1 else n_row)
    cost = pl.CostEstimate(
        flops=4 * M * C * H,                   # two matmuls: 2*M*C*H each
        transcendentals=M * H,                 # erf
        bytes_accessed=M * C * (x_bytes + out_bytes) + w_stream + (H + C) * 4,
    )

    scratch_shapes = [pltpu.VMEM((tm, C), jnp.float32)] if use_scratch else []

    return pl.pallas_call(
        ffn_kernel,
        out_shape=jax.ShapeDtypeStruct((M, C), out_dtype),
        grid_spec=pltpu.PrefetchScalarGridSpec(
            num_scalar_prefetch=0,
            grid=(n_row, n_h),
            in_specs=in_specs,
            out_specs=out_spec,
            scratch_shapes=scratch_shapes,
        ),
        compiler_params=pltpu.CompilerParams(
            dimension_semantics=("parallel", "arbitrary"),
            vmem_limit_bytes=vmem_limit,
        ),
        cost_estimate=cost,
    )(x2d, w1, b1_2d, w2, b2_2d)


def feed_forward(x, w1, b1, w2, b2, *, tm=512, th=None,
                 compute_dtype=jnp.bfloat16):
    """GPT-2 FeedForward: Conv1D(C->4C) -> GELU -> Conv1D(4C->C) -> Dropout(eval).

    x: (B, T, C); w1: (C, H); b1: (H,); w2: (H, C); b2: (C,) with H = 4*C.
    compute_dtype (default bf16, MXU-native on v5e/v6e/v7x) casts the matmul
    operands once in the wrapper; accumulation is f32 and the output keeps x.dtype.
    """
    B, T, C = x.shape
    H = w1.shape[1]
    M = B * T
    out_dtype = x.dtype
    if compute_dtype is None:
        compute_dtype = x.dtype

    vmem_cap = _vmem_capacity_bytes()
    budget = int(0.75 * vmem_cap)
    x_bytes = jnp.dtype(compute_dtype).itemsize
    w_bytes = x_bytes
    out_bytes = jnp.dtype(out_dtype).itemsize
    use_scratch = jnp.dtype(out_dtype) != jnp.dtype(jnp.float32)
    allow_buffered = hasattr(pl, "Buffered")

    # Hidden-dim tile: keep the weights fully VMEM-resident whenever they fit a
    # generation-aware budget (queried from the chip); otherwise tile H with the
    # largest 128-multiple divisor <= 2048.
    if th is None:
        if H < 128 or 2 * C * H * w_bytes <= int(0.45 * vmem_cap):
            th = H
        else:
            th = H  # fallback: resident if no 128-multiple divisor exists
            for cand in range(min(H, 2048), 127, -128):
                if cand < H and H % cand == 0:
                    th = cand
                    break
    assert H % th == 0, "hidden dim must be divisible by the hidden tile"
    n_h = H // th

    # Row tile: large by default for MXU utilization, clamped for tiny inputs,
    # split so there are >=2 row tiles (feeds both v7x TensorCores), and shrunk
    # if the per-step VMEM footprint exceeds the budget.
    tm_eff = min(tm, _round_up(M, 8))
    if -(-M // tm_eff) == 1 and M > 8:
        tm_eff = _round_up(-(-M // 2), 8)
    n_wbuf = 1 if (n_h == 1 and allow_buffered) else 2
    while tm_eff > 8 and _tile_vmem_bytes(tm_eff, th, C, H, x_bytes, w_bytes,
                                          out_bytes, use_scratch, n_wbuf) > budget:
        tm_eff = max(8, _round_up(tm_eff // 2, 8))

    M_pad = _round_up(M, tm_eff)

    # NOTE: C < 128 (demo shapes) means lane-sparse output stores; real GPT-2
    # (C >= 768) is lane-dense and unaffected.
    x2d = x.reshape(M, C).astype(compute_dtype)
    if M_pad != M:
        x2d = jnp.pad(x2d, ((0, M_pad - M), (0, 0)))

    w1 = w1.astype(compute_dtype)
    w2 = w2.astype(compute_dtype)
    b1_2d = b1.reshape(1, H).astype(jnp.float32)
    b2_2d = b2.reshape(1, C).astype(jnp.float32)

    kwargs = dict(tm=tm_eff, th=th, out_dtype=jnp.dtype(out_dtype),
                  vmem_cap=vmem_cap)
    try:
        out2d = _ffn_pallas(x2d, w1, b1_2d, w2, b2_2d,
                            single_buffer=allow_buffered, **kwargs)
    except Exception:
        if not allow_buffered:
            raise
        # Narrow fallback: only pl.Buffered(1) single-buffering is dropped; any
        # other failure (e.g. a genuine VMEM OOM) reproduces here and surfaces.
        out2d = _ffn_pallas(x2d, w1, b1_2d, w2, b2_2d,
                            single_buffer=False, **kwargs)

    # TODO(synk): nn.Dropout is identity in eval mode; training-mode dropout
    # (RNG mask) is intentionally not implemented here.
    return out2d[:M].reshape(B, T, C)


def reference(x, w1, b1, w2, b2):
    B, T, C = x.shape
    x2d = x.reshape(-1, C).astype(jnp.float32)
    h = x2d @ w1.astype(jnp.float32) + b1.astype(jnp.float32)
    h = 0.5 * h * (1.0 + jax.lax.erf(h / jnp.sqrt(2.0)))
    o = h @ w2.astype(jnp.float32) + b2.astype(jnp.float32)
    return o.reshape(B, T, C)


if __name__ == "__main__":
    key = jax.random.PRNGKey(0)

    # --- Test 1: module demo shapes (n_embd=32), exact f32 path, resident weights ---
    B, T, n_embd = 2, 8, 32
    hidden = 4 * n_embd
    k1, k2, k3, key = jax.random.split(key, 4)
    x = jax.random.normal(k1, (B, T, n_embd), dtype=jnp.float32)
    # Conv1D init: normal(std=0.02) weights of shape (nx, nf), zero bias.
    w1 = 0.02 * jax.random.normal(k2, (n_embd, hidden), dtype=jnp.float32)
    b1 = jnp.zeros((hidden,), dtype=jnp.float32)
    w2 = 0.02 * jax.random.normal(k3, (hidden, n_embd), dtype=jnp.float32)
    b2 = jnp.zeros((n_embd,), dtype=jnp.float32)

    out = jax.block_until_ready(
        feed_forward(x, w1, b1, w2, b2, compute_dtype=jnp.float32))
    ref = reference(x, w1, b1, w2, b2)
    assert out.shape == (B, T, n_embd)
    assert jnp.allclose(out, ref, atol=1e-5, rtol=1e-5)

    # --- Test 2: M not divisible by the tile, H-tiled grid (n_h=2), default bf16 ---
    B2, T2, n_embd2 = 2, 7, 64
    hidden2 = 4 * n_embd2
    k1, k2, k3, key = jax.random.split(key, 4)
    x2 = jax.random.normal(k1, (B2, T2, n_embd2), dtype=jnp.float32)
    w1b = 0.02 * jax.random.normal(k2, (n_embd2, hidden2), dtype=jnp.float32)
    b1b = 0.01 * jnp.ones((hidden2,), dtype=jnp.float32)
    w2b = 0.02 * jax.random.normal(k3, (hidden2, n_embd2), dtype=jnp.float32)
    b2b = 0.01 * jnp.ones((n_embd2,), dtype=jnp.float32)

    out2 = jax.block_until_ready(feed_forward(x2, w1b, b1b, w2b, b2b, th=128))
    ref2 = reference(x2, w1b, b1b, w2b, b2b)
    assert out2.shape == (B2, T2, n_embd2)
    assert jnp.allclose(out2, ref2, atol=5e-3, rtol=5e-2)

    # --- Test 3: bf16 activations in/out (scratch-accumulator path) ---
    B3, T3, n_embd3 = 2, 16, 128
    hidden3 = 4 * n_embd3
    k1, k2, k3, key = jax.random.split(key, 4)
    x3 = jax.random.normal(k1, (B3, T3, n_embd3), dtype=jnp.bfloat16)
    w1c = 0.02 * jax.random.normal(k2, (n_embd3, hidden3), dtype=jnp.float32)
    b1c = 0.01 * jnp.ones((hidden3,), dtype=jnp.float32)
    w2c = 0.02 * jax.random.normal(k3, (hidden3, n_embd3), dtype=jnp.float32)
    b2c = 0.01 * jnp.ones((n_embd3,), dtype=jnp.float32)

    out3 = jax.block_until_ready(feed_forward(x3, w1c, b1c, w2c, b2c))
    ref3 = reference(x3, w1c, b1c, w2c, b2c)
    assert out3.shape == (B3, T3, n_embd3)
    assert out3.dtype == jnp.bfloat16
    assert jnp.allclose(out3.astype(jnp.float32), ref3, atol=2e-2, rtol=1e-1)

    print("KERNEL_OK")
</pallas_src>

<mosaic_0001>
module attributes {stable_mosaic.version = 11 : i64} {
  func.func @ffn_kernel(%arg0: i32, %arg1: i32, %arg2: memref<8x32xf32, #tpu.memory_space<vmem>>, %arg3: memref<32x128xf32, #tpu.memory_space<vmem>>, %arg4: memref<1x128xf32, #tpu.memory_space<vmem>>, %arg5: memref<128x32xf32, #tpu.memory_space<vmem>>, %arg6: memref<1x32xf32, #tpu.memory_space<vmem>>, %arg7: memref<8x32xf32, #tpu.memory_space<vmem>>) attributes {dimension_semantics = [#tpu.dimension_semantics<parallel>, #tpu.dimension_semantics<arbitrary>], iteration_bounds = array<i64: 2, 1>, scalar_prefetch = 0 : i64, scratch_operands = 0 : i64, tpu.core_type = #tpu.core_type<tc>, window_params = [{transform_indices = @transform_0, window_bounds = array<i64: 8, 32>}, {pipeline_mode = #tpu.pipeline_mode<synchronous>, transform_indices = @transform_1, window_bounds = array<i64: 32, 128>}, {pipeline_mode = #tpu.pipeline_mode<synchronous>, transform_indices = @transform_2, window_bounds = array<i64: 1, 128>}, {pipeline_mode = #tpu.pipeline_mode<synchronous>, transform_indices = @transform_3, window_bounds = array<i64: 128, 32>}, {pipeline_mode = #tpu.pipeline_mode<synchronous>, transform_indices = @transform_4, window_bounds = array<i64: 1, 32>}, {transform_indices = @transform_5, window_bounds = array<i64: 8, 32>}]} {
    %c0_i32 = arith.constant 0 : i32
    %0 = arith.cmpi eq, %arg1, %c0_i32 : i32
    %1 = arith.extui %0 : i1 to i32
    %c0_i32_0 = arith.constant 0 : i32
    %2 = arith.cmpi ne, %1, %c0_i32_0 : i32
    scf.if %2 {
      %c0_16 = arith.constant 0 : index
      %c0_17 = arith.constant 0 : index
      %22 = vector.load %arg6[%c0_16, %c0_17] : memref<1x32xf32, #tpu.memory_space<vmem>>, vector<1x32xf32>
      %23 = vector.shape_cast %22 : vector<1x32xf32> to vector<1x32xf32>
      %24 = vector.broadcast %23 : vector<1x32xf32> to vector<8x32xf32>
      %c0_18 = arith.constant 0 : index
      %c0_19 = arith.constant 0 : index
      %25 = vector.load %arg7[%c0_18, %c0_19] : memref<8x32xf32, #tpu.memory_space<vmem>>, vector<8x32xf32>
      tpu.vector_store %arg7[%c0_18, %c0_19], %24 {strides = array<i32>} : memref<8x32xf32, #tpu.memory_space<vmem>>, vector<8x32xf32>,
    } else {
    }
    %c0 = arith.constant 0 : index
    %c0_1 = arith.constant 0 : index
    %3 = vector.load %arg2[%c0, %c0_1] : memref<8x32xf32, #tpu.memory_space<vmem>>, vector<8x32xf32>
    %c0_2 = arith.constant 0 : index
    %c0_3 = arith.constant 0 : index
    %4 = vector.load %arg3[%c0_2, %c0_3] : memref<32x128xf32, #tpu.memory_space<vmem>>, vector<32x128xf32>
    %cst = arith.constant dense<0.000000e+00> : vector<8x128xf32>
    %5 = tpu.matmul %3, %4, %cst {dimension_numbers = #tpu.dot_dimension_numbers<[1], [0], [0], [1], [0, 0, 1, 1], [], []>} : vector<8x32xf32>, vector<32x128xf32>, vector<8x128xf32> -> vector<8x128xf32>
    %c0_4 = arith.constant 0 : index
    %c0_5 = arith.constant 0 : index
    %6 = vector.load %arg4[%c0_4, %c0_5] : memref<1x128xf32, #tpu.memory_space<vmem>>, vector<1x128xf32>
    %7 = vector.broadcast %6 : vector<1x128xf32> to vector<8x128xf32>
    %8 = arith.addf %5, %7 : vector<8x128xf32>
    %cst_6 = arith.constant 5.000000e-01 : f32
    %9 = vector.broadcast %cst_6 : f32 to vector<8x128xf32>
    %10 = arith.mulf %9, %8 : vector<8x128xf32>
    %cst_7 = arith.constant 0.707106769 : f32
    %11 = vector.broadcast %cst_7 : f32 to vector<8x128xf32>
    %12 = arith.mulf %8, %11 : vector<8x128xf32>
    %13 = math.erf %12 : vector<8x128xf32>
    %cst_8 = arith.constant 1.000000e+00 : f32
    %14 = vector.broadcast %cst_8 : f32 to vector<8x128xf32>
    %15 = arith.addf %14, %13 : vector<8x128xf32>
    %16 = arith.mulf %10, %15 : vector<8x128xf32>
    %c0_9 = arith.constant 0 : index
    %c0_10 = arith.constant 0 : index
    %17 = vector.load %arg7[%c0_9, %c0_10] : memref<8x32xf32, #tpu.memory_space<vmem>>, vector<8x32xf32>
    %c0_11 = arith.constant 0 : index
    %c0_12 = arith.constant 0 : index
    %18 = vector.load %arg5[%c0_11, %c0_12] : memref<128x32xf32, #tpu.memory_space<vmem>>, vector<128x32xf32>
    %cst_13 = arith.constant dense<0.000000e+00> : vector<8x32xf32>
    %19 = tpu.matmul %16, %18, %cst_13 {dimension_numbers = #tpu.dot_dimension_numbers<[1], [0], [0], [1], [0, 0, 1, 1], [], []>} : vector<8x128xf32>, vector<128x32xf32>, vector<8x32xf32> -> vector<8x32xf32>
    %20 = arith.addf %17, %19 : vector<8x32xf32>
    %c0_14 = arith.constant 0 : index
    %c0_15 = arith.constant 0 : index
    %21 = vector.load %arg7[%c0_14, %c0_15] : memref<8x32xf32, #tpu.memory_space<vmem>>, vector<8x32xf32>
    tpu.vector_store %arg7[%c0_14, %c0_15], %20 {strides = array<i32>} : memref<8x32xf32, #tpu.memory_space<vmem>>, vector<8x32xf32>,
    return
  }
  func.func @transform_0(%arg0: i32, %arg1: i32) -> (i32, i32) {
    %c0_i32 = arith.constant 0 : i32
    %c0_i32_0 = arith.constant 0 : i32
    return %arg0, %c0_i32 : i32, i32
  }
  func.func @transform_1(%arg0: i32, %arg1: i32) -> (i32, i32) {
    %c0_i32 = arith.constant 0 : i32
    %c0_i32_0 = arith.constant 0 : i32
    return %c0_i32, %arg1 : i32, i32
  }
  func.func @transform_2(%arg0: i32, %arg1: i32) -> (i32, i32) {
    %c0_i32 = arith.constant 0 : i32
    %c0_i32_0 = arith.constant 0 : i32
    return %c0_i32, %arg1 : i32, i32
  }
  func.func @transform_3(%arg0: i32, %arg1: i32) -> (i32, i32) {
    %c0_i32 = arith.constant 0 : i32
    %c0_i32_0 = arith.constant 0 : i32
    return %arg1, %c0_i32 : i32, i32
  }
  func.func @transform_4(%arg0: i32, %arg1: i32) -> (i32, i32) {
    %c0_i32 = arith.constant 0 : i32
    %c0_i32_0 = arith.constant 0 : i32
    %c0_i32_1 = arith.constant 0 : i32
    return %c0_i32, %c0_i32_0 : i32, i32
  }
  func.func @transform_5(%arg0: i32, %arg1: i32) -> (i32, i32) {
    %c0_i32 = arith.constant 0 : i32
    %c0_i32_0 = arith.constant 0 : i32
    return %arg0, %c0_i32 : i32, i32
  }
}

module attributes {stable_mosaic.version = 11 : i64} {
  func.func @ffn_kernel(%arg0: i32, %arg1: i32, %arg2: memref<8x32xf32, #tpu.memory_space<vmem>>, %arg3: memref<32x128xf32, #tpu.memory_space<vmem>>, %arg4: memref<1x128xf32, #tpu.memory_space<vmem>>, %arg5: memref<128x32xf32, #tpu.memory_space<vmem>>, %arg6: memref<1x32xf32, #tpu.memory_space<vmem>>, %arg7: memref<8x32xf32, #tpu.memory_space<vmem>>) attributes {dimension_semantics = [#tpu.dimension_semantics<parallel>, #tpu.dimension_semantics<arbitrary>], iteration_bounds = array<i64: 2, 1>, scalar_prefetch = 0 : i64, scratch_operands = 0 : i64, tpu.core_type = #tpu.core_type<tc>, window_params = [{transform_indices = @transform_0, window_bounds = array<i64: 8, 32>}, {transform_indices = @transform_1, window_bounds = array<i64: 32, 128>}, {transform_indices = @transform_2, window_bounds = array<i64: 1, 128>}, {transform_indices = @transform_3, window_bounds = array<i64: 128, 32>}, {pipeline_mode = #tpu.pipeline_mode<synchronous>, transform_indices = @transform_4, window_bounds = array<i64: 1, 32>}, {transform_indices = @transform_5, window_bounds = array<i64: 8, 32>}]} {
    %c0_i32 = arith.constant 0 : i32
    %0 = arith.cmpi eq, %arg1, %c0_i32 : i32
    %1 = arith.extui %0 : i1 to i32
    %c0_i32_0 = arith.constant 0 : i32
    %2 = arith.cmpi ne, %1, %c0_i32_0 : i32
    scf.if %2 {
      %c0_16 = arith.constant 0 : index
      %c0_17 = arith.constant 0 : index
      %22 = vector.load %arg6[%c0_16, %c0_17] : memref<1x32xf32, #tpu.memory_space<vmem>>, vector<1x32xf32>
      %23 = vector.shape_cast %22 : vector<1x32xf32> to vector<1x32xf32>
      %24 = vector.broadcast %23 : vector<1x32xf32> to vector<8x32xf32>
      %c0_18 = arith.constant 0 : index
      %c0_19 = arith.constant 0 : index
      %25 = vector.load %arg7[%c0_18, %c0_19] : memref<8x32xf32, #tpu.memory_space<vmem>>, vector<8x32xf32>
      tpu.vector_store %arg7[%c0_18, %c0_19], %24 {strides = array<i32>} : memref<8x32xf32, #tpu.memory_space<vmem>>, vector<8x32xf32>,
    } else {
    }
    %c0 = arith.constant 0 : index
    %c0_1 = arith.constant 0 : index
    %3 = vector.load %arg2[%c0, %c0_1] : memref<8x32xf32, #tpu.memory_space<vmem>>, vector<8x32xf32>
    %c0_2 = arith.constant 0 : index
    %c0_3 = arith.constant 0 : index
    %4 = vector.load %arg3[%c0_2, %c0_3] : memref<32x128xf32, #tpu.memory_space<vmem>>, vector<32x128xf32>
    %cst = arith.constant dense<0.000000e+00> : vector<8x128xf32>
    %5 = tpu.matmul %3, %4, %cst {dimension_numbers = #tpu.dot_dimension_numbers<[1], [0], [0], [1], [0, 0, 1, 1], [], []>} : vector<8x32xf32>, vector<32x128xf32>, vector<8x128xf32> -> vector<8x128xf32>
    %c0_4 = arith.constant 0 : index
    %c0_5 = arith.constant 0 : index
    %6 = vector.load %arg4[%c0_4, %c0_5] : memref<1x128xf32, #tpu.memory_space<vmem>>, vector<1x128xf32>
    %7 = vector.broadcast %6 : vector<1x128xf32> to vector<8x128xf32>
    %8 = arith.addf %5, %7 : vector<8x128xf32>
    %cst_6 = arith.constant 5.000000e-01 : f32
    %9 = vector.broadcast %cst_6 : f32 to vector<8x128xf32>
    %10 = arith.mulf %9, %8 : vector<8x128xf32>
    %cst_7 = arith.constant 0.707106769 : f32
    %11 = vector.broadcast %cst_7 : f32 to vector<8x128xf32>
    %12 = arith.mulf %8, %11 : vector<8x128xf32>
    %13 = math.erf %12 : vector<8x128xf32>
    %cst_8 = arith.constant 1.000000e+00 : f32
    %14 = vector.broadcast %cst_8 : f32 to vector<8x128xf32>
    %15 = arith.addf %14, %13 : vector<8x128xf32>
    %16 = arith.mulf %10, %15 : vector<8x128xf32>
    %c0_9 = arith.constant 0 : index
    %c0_10 = arith.constant 0 : index
    %17 = vector.load %arg7[%c0_9, %c0_10] : memref<8x32xf32, #tpu.memory_space<vmem>>, vector<8x32xf32>
    %c0_11 = arith.constant 0 : index
    %c0_12 = arith.constant 0 : index
    %18 = vector.load %arg5[%c0_11, %c0_12] : memref<128x32xf32, #tpu.memory_space<vmem>>, vector<128x32xf32>
    %cst_13 = arith.constant dense<0.000000e+00> : vector<8x32xf32>
    %19 = tpu.matmul %16, %18, %cst_13 {dimension_numbers = #tpu.dot_dimension_numbers<[1], [0], [0], [1], [0, 0, 1, 1], [], []>} : vector<8x128xf32>, vector<128x32xf32>, vector<8x32xf32> -> vector<8x32xf32>
    %20 = arith.addf %17, %19 : vector<8x32xf32>
    %c0_14 = arith.constant 0 : index
    %c0_15 = arith.constant 0 : index
    %21 = vector.load %arg7[%c0_14, %c0_15] : memref<8x32xf32, #tpu.memory_space<vmem>>, vector<8x32xf32>
    tpu.vector_store %arg7[%c0_14, %c0_15], %20 {strides = array<i32>} : memref<8x32xf32, #tpu.memory_space<vmem>>, vector<8x32xf32>,
    return
  }
  func.func @transform_0(%arg0: i32, %arg1: i32) -> (i32, i32) {
    %c0_i32 = arith.constant 0 : i32
    %c0_i32_0 = arith.constant 0 : i32
    return %arg0, %c0_i32 : i32, i32
  }
  func.func @transform_1(%arg0: i32, %arg1: i32) -> (i32, i32) {
    %c0_i32 = arith.constant 0 : i32
    %c0_i32_0 = arith.constant 0 : i32
    return %c0_i32, %arg1 : i32, i32
  }
  func.func @transform_2(%arg0: i32, %arg1: i32) -> (i32, i32) {
    %c0_i32 = arith.constant 0 : i32
    %c0_i32_0 = arith.constant 0 : i32
    return %c0_i32, %arg1 : i32, i32
  }
  func.func @transform_3(%arg0: i32, %arg1: i32) -> (i32, i32) {
    %c0_i32 = arith.constant 0 : i32
    %c0_i32_0 = arith.constant 0 : i32
    return %arg1, %c0_i32 : i32, i32
  }
  func.func @transform_4(%arg0: i32, %arg1: i32) -> (i32, i32) {
    %c0_i32 = arith.constant 0 : i32
    %c0_i32_0 = arith.constant 0 : i32
    %c0_i32_1 = arith.constant 0 : i32
    return %c0_i32, %c0_i32_0 : i32, i32
  }
  func.func @transform_5(%arg0: i32, %arg1: i32) -> (i32, i32) {
    %c0_i32 = arith.constant 0 : i32
    %c0_i32_0 = arith.constant 0 : i32
    return %arg0, %c0_i32 : i32, i32
  }
}

</mosaic_0001>

<llo_original>
// kernel: _ffn_pallas.1
$region0: #{_ffn_pallas.1}
  #allocation0 [shape = 'u32[]', space=smem, size = 0x4, offset = 0x4, fixed_abs, tag = 'smem constant byte address 0x4 - core index']
  #allocation1 [shape = 'u32[72,128]{1,0:T(1,128)}', space=vmem, size = 0x9000, scoped, tag = 'internal scratch']
  %s0 = inlined_call_operand.vmem [shape: f32[16,32], index: 0, kind: input, shape index: {}]
  %s1 = inlined_call_operand.vmem [shape: f32[32,128], index: 1, kind: input, shape index: {}]
  %s2 = inlined_call_operand.vmem [shape: f32[1,128], index: 2, kind: input, shape index: {}]
  %s3 = inlined_call_operand.vmem [shape: f32[128,32], index: 3, kind: input, shape index: {}]
  %s4 = inlined_call_operand.vmem [shape: f32[1,32], index: 4, kind: input, shape index: {}]
  %s5 = inlined_call_operand.hbm [shape: f32[16,32], index: 5, kind: output, shape index: {}]
  %s6 = sld [smem:[#allocation0]]
  $region57: #{_ffn_pallas.1} parent=0
    _
  %s8 = ssub.s32 1, %s6
  %s9 = scalar_select 0, %s8, %s6
  $region1: #{_ffn_pallas.1} parent=0
    #allocation2 [shape = 'u8[8192]{0}', space=vmem, size = 0x2000, scoped, tag = 'output window, operand 0']
    #allocation3 [shape = 's32[2]{0}', space=sflag, size = 0x8, scoped, tag = 'scoped memory for _ffn_pallas.1']
    %10 = vsyncpa [#allocation3], 0
    %s11 = scalar_lea.sflag [#allocation3], 1
    %12 = vsyncpa %s11, 0
    loop: start=0, step=1, limit=4
    $region2: #{_ffn_pallas.1} parent=1 // loop_pre_header
      _
    $region3: #{_ffn_pallas.1} parent=1 // loop_header
      %s14 = sphi 0, %s18
      %p15 = scmp.ge.s32.totalorder %s14, 4
      %s21 = sphi 0, %s33
      %s22 = sphi 0, %s29
      %s23 = sphi 0, %s21
      %s24 = sphi 0, %s22
      %s25 = sphi 0, %s23
      %s26 = sphi 0, %s24
      %s36 = sphi 0, %s38
      %s39 = sphi 0, %s36
      %s40 = sphi 0, %s39
      %s56 = sphi 0, %s40
      %s62 = sphi 0, %s64
      %s65 = sphi 0, %s62
      %s66 = sphi 0, %s65
      %s82 = sphi 0, %s66
      %s88 = sphi 0, %s90
      %s91 = sphi 0, %s88
      %s92 = sphi 0, %s91
      %s108 = sphi 0, %s92
      %s114 = sphi 0, %s116
      %s117 = sphi 0, %s114
      %s118 = sphi 0, %s117
      %s134 = sphi 0, %s118
      %s138 = sphi 0, %s138
      %s140 = sphi 0, %s138
      %s141 = sphi 0, %s140
      %s155 = sphi 0, %s141
      %s161 = sphi 0, %s163
      %s164 = sphi 0, %s161
      %s165 = sphi 0, %s164
      %s181 = sphi 0, %s165
    $region4: #{_ffn_pallas.1} parent=1 // loop_header_branch
      %17 = sbr.rel (%p15) target = $region8
    $region5: #{_ffn_pallas.1} parent=1 // loop_body
      %s19 = ssub.s32 %s14, 1
      %s20 = ssub.s32 %s14, 2
      %s27 = sadd.s32 1, %s22
      %p28 = scmp.ge.s32.totalorder %s27, 1
      %s29 = scalar_select %p28, 0, %s27
      %s30 = sadd.s32 1, %s21
      %s31 = scalar_select %p28, %s30, %s21
      %p32 = scmp.ge.s32.totalorder %s31, 2
      %s33 = scalar_select %p32, 0, %s31
      %s34 = ssub.s32 %s21, %s33
      %p35 = scmp.eq.s32.totalorder %s34, 0
      %s37 = sadd.s32 %s36, 1
      %s38 = scalar_select %p35, %s36, %s37
      %p41 = pneg %p35
      %p42 = scmp.eq.s32.totalorder %s14, 1
      %p43 = por %p41, %p42
      %p44 = scmp.ne.s32.totalorder %s36, %s39
      %p45 = scmp.eq.s32.totalorder %s14, 0
      %p46 = por %p44, %p45
      %p47 = scmp.ne.s32.totalorder %s36, %s39
      %p48 = scmp.eq.s32.totalorder %s19, 1
      %p49 = por %p47, %p48
      %p50 = scmp.ne.s32.totalorder %s39, %s40
      %p51 = scmp.eq.s32.totalorder %s19, 0
      %p52 = por %p50, %p51
      %p53 = scmp.ne.s32.totalorder %s39, %s40
      %p54 = scmp.eq.s32.totalorder %s20, 1
      %p55 = por %p53, %p54
      %p57 = scmp.ne.s32.totalorder %s40, %s56
      %p58 = scmp.eq.s32.totalorder %s20, 0
      %p59 = por %p57, %p58
      %s60 = ssub.s32 %s22, %s29
      %p61 = scmp.eq.s32.totalorder %s60, 0
      %s63 = sadd.s32 %s62, 1
      %s64 = scalar_select %p61, %s62, %s63
      %p67 = pneg %p61
      %p68 = scmp.eq.s32.totalorder %s14, 1
      %p69 = por %p67, %p68
      %p70 = scmp.ne.s32.totalorder %s62, %s65
      %p71 = scmp.eq.s32.totalorder %s14, 0
      %p72 = por %p70, %p71
      %p73 = scmp.ne.s32.totalorder %s62, %s65
      %p74 = scmp.eq.s32.totalorder %s19, 1
      %p75 = por %p73, %p74
      %p76 = scmp.ne.s32.totalorder %s65, %s66
      %p77 = scmp.eq.s32.totalorder %s19, 0
      %p78 = por %p76, %p77
      %p79 = scmp.ne.s32.totalorder %s65, %s66
      %p80 = scmp.eq.s32.totalorder %s20, 1
      %p81 = por %p79, %p80
      %p83 = scmp.ne.s32.totalorder %s66, %s82
      %p84 = scmp.eq.s32.totalorder %s20, 0
      %p85 = por %p83, %p84
      %s86 = ssub.s32 %s22, %s29
      %p87 = scmp.eq.s32.totalorder %s86, 0
      %s89 = sadd.s32 %s88, 1
      %s90 = scalar_select %p87, %s88, %s89
      %p93 = pneg %p87
      %p94 = scmp.eq.s32.totalorder %s14, 1
      %p95 = por %p93, %p94
      %p96 = scmp.ne.s32.totalorder %s88, %s91
      %p97 = scmp.eq.s32.totalorder %s14, 0
      %p98 = por %p96, %p97
      %p99 = scmp.ne.s32.totalorder %s88, %s91
      %p100 = scmp.eq.s32.totalorder %s19, 1
      %p101 = por %p99, %p100
      %p102 = scmp.ne.s32.totalorder %s91, %s92
      %p103 = scmp.eq.s32.totalorder %s19, 0
      %p104 = por %p102, %p103
      %p105 = scmp.ne.s32.totalorder %s91, %s92
      %p106 = scmp.eq.s32.totalorder %s20, 1
      %p107 = por %p105, %p106
      %p109 = scmp.ne.s32.totalorder %s92, %s108
      %p110 = scmp.eq.s32.totalorder %s20, 0
      %p111 = por %p109, %p110
      %s112 = ssub.s32 %s22, %s29
      %p113 = scmp.eq.s32.totalorder %s112, 0
      %s115 = sadd.s32 %s114, 1
      %s116 = scalar_select %p113, %s114, %s115
      %p119 = pneg %p113
      %p120 = scmp.eq.s32.totalorder %s14, 1
      %p121 = por %p119, %p120
      %p122 = scmp.ne.s32.totalorder %s114, %s117
      %p123 = scmp.eq.s32.totalorder %s14, 0
      %p124 = por %p122, %p123
      %p125 = scmp.ne.s32.totalorder %s114, %s117
      %p126 = scmp.eq.s32.totalorder %s19, 1
      %p127 = por %p125, %p126
      %p128 = scmp.ne.s32.totalorder %s117, %s118
      %p129 = scmp.eq.s32.totalorder %s19, 0
      %p130 = por %p128, %p129
      %p131 = scmp.ne.s32.totalorder %s117, %s118
      %p132 = scmp.eq.s32.totalorder %s20, 1
      %p133 = por %p131, %p132
      %p135 = scmp.ne.s32.totalorder %s118, %s134
      %p136 = scmp.eq.s32.totalorder %s20, 0
      %p137 = por %p135, %p136
      %s139 = sadd.s32 %s138, 1
      %p142 = scmp.eq.s32.totalorder %s14, 1
      %p143 = scmp.ne.s32.totalorder %s138, %s140
      %p144 = scmp.eq.s32.totalorder %s14, 0
      %p145 = por %p143, %p144
      %p146 = scmp.ne.s32.totalorder %s138, %s140
      %p147 = scmp.eq.s32.totalorder %s19, 1
      %p148 = por %p146, %p147
      %p149 = scmp.ne.s32.totalorder %s140, %s141
      %p150 = scmp.eq.s32.totalorder %s19, 0
      %p151 = por %p149, %p150
      %p152 = scmp.ne.s32.totalorder %s140, %s141
      %p153 = scmp.eq.s32.totalorder %s20, 1
      %p154 = por %p152, %p153
      %p156 = scmp.ne.s32.totalorder %s141, %s155
      %p157 = scmp.eq.s32.totalorder %s20, 0
      %p158 = por %p156, %p157
      %s159 = ssub.s32 %s21, %s33
      %p160 = scmp.eq.s32.totalorder %s159, 0
      %s162 = sadd.s32 %s161, 1
      %s163 = scalar_select %p160, %s161, %s162
      %p166 = pneg %p160
      %p167 = scmp.eq.s32.totalorder %s14, 1
      %p168 = por %p166, %p167
      %p169 = scmp.ne.s32.totalorder %s161, %s164
      %p170 = scmp.eq.s32.totalorder %s14, 0
      %p171 = por %p169, %p170
      %p172 = scmp.ne.s32.totalorder %s161, %s164
      %p173 = scmp.eq.s32.totalorder %s19, 1
      %p174 = por %p172, %p173
      %p175 = scmp.ne.s32.totalorder %s164, %s165
      %p176 = scmp.eq.s32.totalorder %s19, 0
      %p177 = por %p175, %p176
      %p178 = scmp.ne.s32.totalorder %s164, %s165
      %p179 = scmp.eq.s32.totalorder %s20, 1
      %p180 = por %p178, %p179
      %p182 = scmp.ne.s32.totalorder %s165, %s181
      %p183 = scmp.eq.s32.totalorder %s20, 0
      %p184 = por %p182, %p183
      %p185 = scmp.le.s32.totalorder 1, %s14
      %p186 = scmp.lt.s32.totalorder %s14, 3
      %p187 = pnand %p185, %p186
      %p188 = pneg %p187
      // Predicated region
      $region9: #{_ffn_pallas.1} parent=5 // pred_check
        _
      $region10: #{_ffn_pallas.1} parent=5 // pred_check_branch
        %190 = sbr.rel (%p187) target = $region12
      $region11: #{_ffn_pallas.1} parent=5 // pred_region
        %s191 = ssub.s32 %s14, 1
        // Predicated region
        $region13: #{_ffn_pallas.1} parent=11 // pred_check
          %p192 = pneg %p78
        $region14: #{_ffn_pallas.1} parent=11 // pred_check_branch
          %194 = sbr.rel (%p192) target = $region16
        $region15: #{_ffn_pallas.1} parent=11 // pred_region
          %p195 = scmp.lt.s32.totalorder %s24, 0
          %s196 = scalar_select %p195, %s24, 0
          %s197 = smul.addr %s196, 8
          %s198 = scalar_lea.vmem %s1, %s197
        $region16: #{_ffn_pallas.1} parent=11 // pred_fallthru
          _
        // Predicated region
        $region17: #{_ffn_pallas.1} parent=11 // pred_check
          %p199 = pneg %p104
        $region18: #{_ffn_pallas.1} parent=11 // pred_check_branch
          %201 = sbr.rel (%p199) target = $region20
        $region19: #{_ffn_pallas.1} parent=11 // pred_region
          %p202 = scmp.lt.s32.totalorder %s24, 0
          %s203 = scalar_select %p202, %s24, 0
          %s204 = scalar_lea.vmem %s2, %s203
        $region20: #{_ffn_pallas.1} parent=11 // pred_fallthru
          _
        // Predicated region
        $region21: #{_ffn_pallas.1} parent=11 // pred_check
          %p205 = pneg %p130
        $region22: #{_ffn_pallas.1} parent=11 // pred_check_branch
          %207 = sbr.rel (%p205) target = $region24
        $region23: #{_ffn_pallas.1} parent=11 // pred_region
          %s208 = smul.u32 16, %s24
          %p209 = scmp.lt.s32.totalorder %s208, 15
          %s210 = scalar_select %p209, %s208, 15
          %s211 = smul.addr %s210, 8
          %s212 = scalar_lea.vmem %s3, %s211
          %s213 = smul.u32 16, %s24
        $region24: #{_ffn_pallas.1} parent=11 // pred_fallthru
          _
        // Predicated region
        $region25: #{_ffn_pallas.1} parent=11 // pred_check
          %p214 = pneg %p151
        $region26: #{_ffn_pallas.1} parent=11 // pred_check_branch
          %216 = sbr.rel (%p214) target = $region28
        $region27: #{_ffn_pallas.1} parent=11 // pred_region
          _
        $region28: #{_ffn_pallas.1} parent=11 // pred_fallthru
          _
      $region12: #{_ffn_pallas.1} parent=5 // pred_fallthru
        _
      %p217 = scmp.lt.s32.totalorder %s14, 2
      // Predicated region
      $region29: #{_ffn_pallas.1} parent=5 // pred_check
        %p218 = pneg %p217
      $region30: #{_ffn_pallas.1} parent=5 // pred_check_branch
        %220 = sbr.rel (%p218) target = $region32
      $region31: #{_ffn_pallas.1} parent=5 // pred_region
        // Predicated region
        $region33: #{_ffn_pallas.1} parent=31 // pred_check
          %p221 = pneg %p46
        $region34: #{_ffn_pallas.1} parent=31 // pred_check_branch
          %223 = sbr.rel (%p221) target = $region36
        $region35: #{_ffn_pallas.1} parent=31 // pred_region
          %p224 = scmp.lt.s32.totalorder %s21, 1
          %s225 = scalar_select %p224, %s21, 1
          %s226 = smul.addr %s225, 8
          %s227 = scalar_lea.vmem %s0, %s226
        $region36: #{_ffn_pallas.1} parent=31 // pred_fallthru
          _
      $region32: #{_ffn_pallas.1} parent=5 // pred_fallthru
        _
      %p228 = scmp.le.s32.totalorder 1, %s14
      %p229 = scmp.lt.s32.totalorder %s14, 3
      %p230 = pnand %p228, %p229
      %p231 = pneg %p230
      // Predicated region
      $region37: #{_ffn_pallas.1} parent=5 // pred_check
        _
      $region38: #{_ffn_pallas.1} parent=5 // pred_check_branch
        %233 = sbr.rel (%p230) target = $region40
      $region39: #{_ffn_pallas.1} parent=5 // pred_region
        %s234 = ssub.s32 %s14, 1
        %p235 = scmp.lt.s32.totalorder %s23, 1
        %s236 = scalar_select %p235, %s23, 1
        %s237 = smul.addr %s236, 8
        %s238 = scalar_lea.vmem %s0, %s237
        %p239 = pneg %p52
        %p240 = pneg %p49
        %p241 = scmp.lt.s32.totalorder %s24, 0
        %s242 = scalar_select %p241, %s24, 0
        %s243 = smul.addr %s242, 8
        %s244 = scalar_lea.vmem %s1, %s243
        %p245 = pneg %p78
        %p246 = pneg %p75
        %p247 = scmp.lt.s32.totalorder %s24, 0
        %s248 = scalar_select %p247, %s24, 0
        %s249 = scalar_lea.vmem %s2, %s248
        %p250 = pneg %p104
        %p251 = pneg %p101
        %s252 = smul.u32 16, %s24
        %p253 = scmp.lt.s32.totalorder %s252, 15
        %s254 = scalar_select %p253, %s252, 15
        %s255 = smul.addr %s254, 8
        %s256 = scalar_lea.vmem %s3, %s255
        %p257 = pneg %p130
        %p258 = pneg %p127
        %p259 = pneg %p151
        %p260 = pneg %p148
        %p261 = pneg %p177
        %p262 = pneg %p174
        %s263 = sand.u32 %s164, 1
        %s264 = scalar_lea.sflag [#allocation3], %s263
        %s265 = sand.u32 %s164, 1
        %s266 = smul.addr %s265, 8
        %s267 = scalar_lea.vmem [#allocation2], %s266
        %p268 = scmp.lt.s32.totalorder %s23, 1
        %s269 = scalar_select %p268, %s23, 1
        %s270 = smul.addr %s269, 8
        %s271 = scalar_lea.vmem %s0, %s270
        %p272 = scmp.lt.s32.totalorder %s24, 0
        %s273 = scalar_select %p272, %s24, 0
        %s274 = smul.addr %s273, 8
        %s275 = scalar_lea.vmem %s1, %s274
        %p276 = scmp.lt.s32.totalorder %s24, 0
        %s277 = scalar_select %p276, %s24, 0
        %s278 = scalar_lea.vmem %s2, %s277
        %s279 = smul.u32 16, %s24
        %p280 = scmp.lt.s32.totalorder %s279, 15
        %s281 = scalar_select %p280, %s279, 15
        %s282 = smul.addr %s281, 8
        %s283 = scalar_lea.vmem %s3, %s282
        %s284 = smul.u32 16, %s24
        %p285 = scmp.eq.s32.totalorder %s24, 0
        // Predicated region
        $region41: #{_ffn_pallas.1} parent=39 // pred_check
          %p286 = pneg %p285
        $region42: #{_ffn_pallas.1} parent=39 // pred_check_branch
          %288 = sbr.rel (%p286) target = $region44
        $region43: #{_ffn_pallas.1} parent=39 // pred_region
          %v289 = vld [vmem:[%s4] sm:$0x1]
          %v291 = vperm.slane %v289, 0
          %vm293 = vcmask 261120
          %294 = vst.msk [vmem:[%s267] sm:$0xff] %vm293, %v291
        $region44: #{_ffn_pallas.1} parent=39 // pred_fallthru
          _
        %v295 = vld [vmem:[%s271] sm:$0xff]
        %v296 = vld [vmem:[%s275] sm:$0xff]
        %v297 = vld [vmem:[%s275 + $0x8] sm:$0xff]
        %v298 = vld [vmem:[%s275 + $0x10] sm:$0xff]
        %v299 = vld [vmem:[%s275 + $0x18] sm:$0xff]
        %v300 = vld [vmem:[%s278] sm:$0x1]
        %v302 = vperm.slane %v300, 0
        %vm304 = vcmask 261120
        %v306 = vsel %vm304, %v295, 0
        %308 = vmatpush.msra.mxu0 0.0
        %309 = vmatpush.msra.mxu0 0.0
        %310 = vmatpush.msra.mxu0 0.0
        %311 = vmatpush.msra.mxu0 0.0
        %312 = vmatpush.msra.mxu0 0.0
        %313 = vmatpush.msra.mxu0 0.0
        %314 = vmatpush.msra.mxu0 0.0
        %315 = vmatpush.msra.mxu0 0.0
        %316 = vmatpush.msra.mxu0 0.0
        %317 = vmatpush.msra.mxu0 0.0
        %318 = vmatpush.msra.mxu0 0.0
        %319 = vmatpush.msra.mxu0 0.0
        %320 = vmatpush.msra.mxu0 %v299
        %321 = vmatpush.msra.mxu0 %v298
        %322 = vmatpush.msra.mxu0 %v297
        %323 = vmatpush.msra.mxu0 %v296
        %324 = vmatmul.f32.gmra.mxu0 %v306
        %v325 = vpop.f32.mrf.mxu0
        %v326 = vadd.f32 %v302, %v325
        %327 = vdwg.mxu0
        %v328 = vmul.f32 %v326, 0.5
        %v329 = vmul.f32 %v326, 0.70710677
        %v330 = vmul.f32 %v329, %v329
        %v331 = vmin.f32 16.0, %v330
        %v332 = vmul.f32 %v331, 2.1237322e-06
        %v333 = vadd.f32 %v332, 0.00028619796
        %v334 = vmul.f32 %v331, %v333
        %v335 = vadd.f32 %v334, 0.0036580483
        %v336 = vmul.f32 %v331, %v335
        %v337 = vadd.f32 %v336, 0.05243302
        %v338 = vmul.f32 %v331, %v337
        %v339 = vadd.f32 %v338, 0.18741608
        %v340 = vmul.f32 %v331, %v339
        %v341 = vadd.f32 %v340, 1.1283791
        %v342 = vmul.f32 %v329, %v341
        %v343 = vmul.f32 %v331, 3.8918573e-05
        %v344 = vadd.f32 %v343, 0.001143296
        %v345 = vmul.f32 %v331, %v344
        %v346 = vadd.f32 %v345, 0.014752088
        %v347 = vmul.f32 %v331, %v346
        %v348 = vadd.f32 %v347, 0.112945676
        %v349 = vmul.f32 %v331, %v348
        %v350 = vadd.f32 %v349, 0.4994258
        %v351 = vmul.f32 %v331, %v350
        %v352 = vadd.f32 %v351, 1.0
        %v353 = vrcp.pop %v352
        %v354 = vmul.f32 %v352, %v353
        %v355 = vsub.f32 1.0, %v354
        %v356 = vmul.f32 %v353, %v355
        %v357 = vadd.f32 %v353, %v356
        %vm358 = vweird.f32 %v352
        %vm359 = vweird.f32 %v353
        %vm360 = vmor %vm358, %vm359
        %v361 = vsel %vm360, %v353, %v357
        %v362 = vand.u32 2147483647, %v352
        %vm363 = vcmp.eq.f32.partialorder %v362, 8.507059e+37
        %v364 = vand.u32 %v352, 2147483648
        %v365 = vor.u32 1.1754944e-38, %v364
        %v366 = vsel %vm363, %v365, %v361
        %v367 = vmul.f32 %v342, %v366
        %v368 = vmin.f32 %v367, 1.0
        %v369 = vmax.f32 %v368, -1.0
        %v370 = vadd.f32 %v369, 1.0
        %v371 = vmul.f32 %v328, %v370
        %v372 = vld [vmem:[%s267] sm:$0xff]
        %v373 = vld [vmem:[%s283] sm:$0xff]
        %v374 = vld [vmem:[%s283 + $0x8] sm:$0xff]
        %v375 = vld [vmem:[%s283 + $0x10] sm:$0xff]
        %v376 = vld [vmem:[%s283 + $0x18] sm:$0xff]
        %v377 = vld [vmem:[%s283 + $0x20] sm:$0xff]
        %v378 = vld [vmem:[%s283 + $0x28] sm:$0xff]
        %v379 = vld [vmem:[%s283 + $0x30] sm:$0xff]
        %v380 = vld [vmem:[%s283 + $0x38] sm:$0xff]
        %v381 = vld [vmem:[%s283 + $0x40] sm:$0xff]
        %v382 = vld [vmem:[%s283 + $0x48] sm:$0xff]
        %v383 = vld [vmem:[%s283 + $0x50] sm:$0xff]
        %v384 = vld [vmem:[%s283 + $0x58] sm:$0xff]
        %v385 = vld [vmem:[%s283 + $0x60] sm:$0xff]
        %v386 = vld [vmem:[%s283 + $0x68] sm:$0xff]
        %v387 = vld [vmem:[%s283 + $0x70] sm:$0xff]
        %v388 = vld [vmem:[%s283 + $0x78] sm:$0xff]
        %389 = vmatpush.msra.mxu0 %v388
        %390 = vmatpush.msra.mxu0 %v387
        %391 = vmatpush.msra.mxu0 %v386
        %392 = vmatpush.msra.mxu0 %v385
        %393 = vmatpush.msra.mxu0 %v384
        %394 = vmatpush.msra.mxu0 %v383
        %395 = vmatpush.msra.mxu0 %v382
        %396 = vmatpush.msra.mxu0 %v381
        %397 = vmatpush.msra.mxu0 %v380
        %398 = vmatpush.msra.mxu0 %v379
        %399 = vmatpush.msra.mxu0 %v378
        %400 = vmatpush.msra.mxu0 %v377
        %401 = vmatpush.msra.mxu0 %v376
        %402 = vmatpush.msra.mxu0 %v375
        %403 = vmatpush.msra.mxu0 %v374
        %404 = vmatpush.msra.mxu0 %v373
        %405 = vmatmul.f32.gmra.mxu0 %v371
        %v406 = vpop.f32.mrf.mxu0
        %v407 = vadd.f32 0.0, %v406
        %408 = vdwg.mxu0
        %v409 = vadd.f32 %v372, %v407
        %410 = vst.msk [vmem:[%s267] sm:$0xff] %vm304, %v409
        %s411 = sand.u32 %s164, 1
        %s412 = scalar_lea.sflag [#allocation3], %s411
        %s413 = sand.u32 %s164, 1
        %s414 = smul.addr %s413, 8
        %s415 = scalar_lea.vmem [#allocation2], %s414
        // Predicated region
        $region45: #{_ffn_pallas.1} parent=39 // pred_check
          %p416 = pneg %p174
        $region46: #{_ffn_pallas.1} parent=39 // pred_check_branch
          %418 = sbr.rel (%p416) target = $region48
        $region47: #{_ffn_pallas.1} parent=39 // pred_region
          %420 = vsyncadd %s412, 0
          %s421 = smul.addr %s23, 8
          %s422 = scalar_lea.hbm %s5, %s421
          %s424 = sshll.u32 %s415, 4
          %s425 = int_to_ptr.vmem [resolvable:$true] %s424
          %s426 = sshll.u32 %s422, 4
          %s427 = int_to_ptr.hbm [resolvable:$true] %s426
          %429 = dma.vmem_to_hbm [thread:$0]  %s425, 128, %s427, %s412
        $region48: #{_ffn_pallas.1} parent=39 // pred_fallthru
          _
      $region40: #{_ffn_pallas.1} parent=5 // pred_fallthru
        _
      %p430 = scmp.le.s32.totalorder 2, %s14
      // Predicated region
      $region49: #{_ffn_pallas.1} parent=5 // pred_check
        %p431 = pneg %p430
      $region50: #{_ffn_pallas.1} parent=5 // pred_check_branch
        %433 = sbr.rel (%p431) target = $region52
      $region51: #{_ffn_pallas.1} parent=5 // pred_region
        %s434 = ssub.s32 %s14, 2
        // Predicated region
        $region53: #{_ffn_pallas.1} parent=51 // pred_check
          %p435 = pneg %p180
        $region54: #{_ffn_pallas.1} parent=51 // pred_check_branch
          %437 = sbr.rel (%p435) target = $region56
        $region55: #{_ffn_pallas.1} parent=51 // pred_region
          %s438 = sand.u32 %s165, 1
          %s439 = scalar_lea.sflag [#allocation3], %s438
          %s440 = sand.u32 %s165, 1
          %s441 = smul.addr %s440, 8
          %s442 = scalar_lea.vmem [#allocation2], %s441
          %444 = dma.done %s439, 128
        $region56: #{_ffn_pallas.1} parent=51 // pred_fallthru
          _
      $region52: #{_ffn_pallas.1} parent=5 // pred_fallthru
        _
    $region6: #{_ffn_pallas.1} parent=1 // loop_footer
      %s18 = sadd.s32 1, %s14
    $region7: #{_ffn_pallas.1} parent=1 // loop_footer_branch
      %13 = sbr.rel target = $region3
    $region8: #{_ffn_pallas.1} parent=1 // loop_exit
      _
    %445 = vsyncpa [#allocation3], 1
    %s446 = scalar_lea.sflag [#allocation3], 1
    %447 = vsyncpa %s446, 1

// kernel: _ffn_pallas.1
$region0: #{_ffn_pallas.1}
  #allocation0 [shape = 'u32[]', space=smem, size = 0x4, offset = 0x4, fixed_abs, tag = 'smem constant byte address 0x4 - core index']
  #allocation1 [shape = 'u32[72,128]{1,0:T(1,128)}', space=vmem, size = 0x9000, scoped, tag = 'internal scratch']
  %s0 = inlined_call_operand.vmem [shape: f32[16,32], index: 0, kind: input, shape index: {}]
  %s1 = inlined_call_operand.vmem [shape: f32[32,128], index: 1, kind: input, shape index: {}]
  %s2 = inlined_call_operand.vmem [shape: f32[1,128], index: 2, kind: input, shape index: {}]
  %s3 = inlined_call_operand.vmem [shape: f32[128,32], index: 3, kind: input, shape index: {}]
  %s4 = inlined_call_operand.vmem [shape: f32[1,32], index: 4, kind: input, shape index: {}]
  %s5 = inlined_call_operand.hbm [shape: f32[16,32], index: 5, kind: output, shape index: {}]
  %s6 = sld [smem:[#allocation0]]
  $region57: #{_ffn_pallas.1} parent=0
    _
  %s8 = ssub.s32 1, %s6
  %s9 = scalar_select 0, %s8, %s6
  $region1: #{_ffn_pallas.1} parent=0
    #allocation2 [shape = 'u8[8192]{0}', space=vmem, size = 0x2000, scoped, tag = 'output window, operand 0']
    #allocation3 [shape = 's32[2]{0}', space=sflag, size = 0x8, scoped, tag = 'scoped memory for _ffn_pallas.1']
    %10 = vsyncpa [#allocation3], 0
    %s11 = scalar_lea.sflag [#allocation3], 1
    %12 = vsyncpa %s11, 0
    loop: start=0, step=1, limit=4
    $region2: #{_ffn_pallas.1} parent=1 // loop_pre_header
      _
    $region3: #{_ffn_pallas.1} parent=1 // loop_header
      %s14 = sphi 0, %s18
      %p15 = scmp.ge.s32.totalorder %s14, 4
      %s21 = sphi 0, %s33
      %s22 = sphi 0, %s29
      %s23 = sphi 0, %s21
      %s24 = sphi 0, %s22
      %s25 = sphi 0, %s23
      %s26 = sphi 0, %s24
      %s36 = sphi 0, %s38
      %s39 = sphi 0, %s36
      %s40 = sphi 0, %s39
      %s56 = sphi 0, %s40
      %s62 = sphi 0, %s64
      %s65 = sphi 0, %s62
      %s66 = sphi 0, %s65
      %s82 = sphi 0, %s66
      %s88 = sphi 0, %s90
      %s91 = sphi 0, %s88
      %s92 = sphi 0, %s91
      %s108 = sphi 0, %s92
      %s114 = sphi 0, %s116
      %s117 = sphi 0, %s114
      %s118 = sphi 0, %s117
      %s134 = sphi 0, %s118
      %s138 = sphi 0, %s138
      %s140 = sphi 0, %s138
      %s141 = sphi 0, %s140
      %s155 = sphi 0, %s141
      %s161 = sphi 0, %s163
      %s164 = sphi 0, %s161
      %s165 = sphi 0, %s164
      %s181 = sphi 0, %s165
    $region4: #{_ffn_pallas.1} parent=1 // loop_header_branch
      %17 = sbr.rel (%p15) target = $region8
    $region5: #{_ffn_pallas.1} parent=1 // loop_body
      %s19 = ssub.s32 %s14, 1
      %s20 = ssub.s32 %s14, 2
      %s27 = sadd.s32 1, %s22
      %p28 = scmp.ge.s32.totalorder %s27, 1
      %s29 = scalar_select %p28, 0, %s27
      %s30 = sadd.s32 1, %s21
      %s31 = scalar_select %p28, %s30, %s21
      %p32 = scmp.ge.s32.totalorder %s31, 2
      %s33 = scalar_select %p32, 0, %s31
      %s34 = ssub.s32 %s21, %s33
      %p35 = scmp.eq.s32.totalorder %s34, 0
      %s37 = sadd.s32 %s36, 1
      %s38 = scalar_select %p35, %s36, %s37
      %p41 = pneg %p35
      %p42 = scmp.eq.s32.totalorder %s14, 1
      %p43 = por %p41, %p42
      %p44 = scmp.ne.s32.totalorder %s36, %s39
      %p45 = scmp.eq.s32.totalorder %s14, 0
      %p46 = por %p44, %p45
      %p47 = scmp.ne.s32.totalorder %s36, %s39
      %p48 = scmp.eq.s32.totalorder %s19, 1
      %p49 = por %p47, %p48
      %p50 = scmp.ne.s32.totalorder %s39, %s40
      %p51 = scmp.eq.s32.totalorder %s19, 0
      %p52 = por %p50, %p51
      %p53 = scmp.ne.s32.totalorder %s39, %s40
      %p54 = scmp.eq.s32.totalorder %s20, 1
      %p55 = por %p53, %p54
      %p57 = scmp.ne.s32.totalorder %s40, %s56
      %p58 = scmp.eq.s32.totalorder %s20, 0
      %p59 = por %p57, %p58
      %s60 = ssub.s32 %s22, %s29
      %p61 = scmp.eq.s32.totalorder %s60, 0
      %s63 = sadd.s32 %s62, 1
      %s64 = scalar_select %p61, %s62, %s63
      %p67 = pneg %p61
      %p68 = scmp.eq.s32.totalorder %s14, 1
      %p69 = por %p67, %p68
      %p70 = scmp.ne.s32.totalorder %s62, %s65
      %p71 = scmp.eq.s32.totalorder %s14, 0
      %p72 = por %p70, %p71
      %p73 = scmp.ne.s32.totalorder %s62, %s65
      %p74 = scmp.eq.s32.totalorder %s19, 1
      %p75 = por %p73, %p74
      %p76 = scmp.ne.s32.totalorder %s65, %s66
      %p77 = scmp.eq.s32.totalorder %s19, 0
      %p78 = por %p76, %p77
      %p79 = scmp.ne.s32.totalorder %s65, %s66
      %p80 = scmp.eq.s32.totalorder %s20, 1
      %p81 = por %p79, %p80
      %p83 = scmp.ne.s32.totalorder %s66, %s82
      %p84 = scmp.eq.s32.totalorder %s20, 0
      %p85 = por %p83, %p84
      %s86 = ssub.s32 %s22, %s29
      %p87 = scmp.eq.s32.totalorder %s86, 0
      %s89 = sadd.s32 %s88, 1
      %s90 = scalar_select %p87, %s88, %s89
      %p93 = pneg %p87
      %p94 = scmp.eq.s32.totalorder %s14, 1
      %p95 = por %p93, %p94
      %p96 = scmp.ne.s32.totalorder %s88, %s91
      %p97 = scmp.eq.s32.totalorder %s14, 0
      %p98 = por %p96, %p97
      %p99 = scmp.ne.s32.totalorder %s88, %s91
      %p100 = scmp.eq.s32.totalorder %s19, 1
      %p101 = por %p99, %p100
      %p102 = scmp.ne.s32.totalorder %s91, %s92
      %p103 = scmp.eq.s32.totalorder %s19, 0
      %p104 = por %p102, %p103
      %p105 = scmp.ne.s32.totalorder %s91, %s92
      %p106 = scmp.eq.s32.totalorder %s20, 1
      %p107 = por %p105, %p106
      %p109 = scmp.ne.s32.totalorder %s92, %s108
      %p110 = scmp.eq.s32.totalorder %s20, 0
      %p111 = por %p109, %p110
      %s112 = ssub.s32 %s22, %s29
      %p113 = scmp.eq.s32.totalorder %s112, 0
      %s115 = sadd.s32 %s114, 1
      %s116 = scalar_select %p113, %s114, %s115
      %p119 = pneg %p113
      %p120 = scmp.eq.s32.totalorder %s14, 1
      %p121 = por %p119, %p120
      %p122 = scmp.ne.s32.totalorder %s114, %s117
      %p123 = scmp.eq.s32.totalorder %s14, 0
      %p124 = por %p122, %p123
      %p125 = scmp.ne.s32.totalorder %s114, %s117
      %p126 = scmp.eq.s32.totalorder %s19, 1
      %p127 = por %p125, %p126
      %p128 = scmp.ne.s32.totalorder %s117, %s118
      %p129 = scmp.eq.s32.totalorder %s19, 0
      %p130 = por %p128, %p129
      %p131 = scmp.ne.s32.totalorder %s117, %s118
      %p132 = scmp.eq.s32.totalorder %s20, 1
      %p133 = por %p131, %p132
      %p135 = scmp.ne.s32.totalorder %s118, %s134
      %p136 = scmp.eq.s32.totalorder %s20, 0
      %p137 = por %p135, %p136
      %s139 = sadd.s32 %s138, 1
      %p142 = scmp.eq.s32.totalorder %s14, 1
      %p143 = scmp.ne.s32.totalorder %s138, %s140
      %p144 = scmp.eq.s32.totalorder %s14, 0
      %p145 = por %p143, %p144
      %p146 = scmp.ne.s32.totalorder %s138, %s140
      %p147 = scmp.eq.s32.totalorder %s19, 1
      %p148 = por %p146, %p147
      %p149 = scmp.ne.s32.totalorder %s140, %s141
      %p150 = scmp.eq.s32.totalorder %s19, 0
      %p151 = por %p149, %p150
      %p152 = scmp.ne.s32.totalorder %s140, %s141
      %p153 = scmp.eq.s32.totalorder %s20, 1
      %p154 = por %p152, %p153
      %p156 = scmp.ne.s32.totalorder %s141, %s155
      %p157 = scmp.eq.s32.totalorder %s20, 0
      %p158 = por %p156, %p157
      %s159 = ssub.s32 %s21, %s33
      %p160 = scmp.eq.s32.totalorder %s159, 0
      %s162 = sadd.s32 %s161, 1
      %s163 = scalar_select %p160, %s161, %s162
      %p166 = pneg %p160
      %p167 = scmp.eq.s32.totalorder %s14, 1
      %p168 = por %p166, %p167
      %p169 = scmp.ne.s32.totalorder %s161, %s164
      %p170 = scmp.eq.s32.totalorder %s14, 0
      %p171 = por %p169, %p170
      %p172 = scmp.ne.s32.totalorder %s161, %s164
      %p173 = scmp.eq.s32.totalorder %s19, 1
      %p174 = por %p172, %p173
      %p175 = scmp.ne.s32.totalorder %s164, %s165
      %p176 = scmp.eq.s32.totalorder %s19, 0
      %p177 = por %p175, %p176
      %p178 = scmp.ne.s32.totalorder %s164, %s165
      %p179 = scmp.eq.s32.totalorder %s20, 1
      %p180 = por %p178, %p179
      %p182 = scmp.ne.s32.totalorder %s165, %s181
      %p183 = scmp.eq.s32.totalorder %s20, 0
      %p184 = por %p182, %p183
      %p185 = scmp.le.s32.totalorder 1, %s14
      %p186 = scmp.lt.s32.totalorder %s14, 3
      %p187 = pnand %p185, %p186
      %p188 = pneg %p187
      // Predicated region
      $region9: #{_ffn_pallas.1} parent=5 // pred_check
        _
      $region10: #{_ffn_pallas.1} parent=5 // pred_check_branch
        %190 = sbr.rel (%p187) target = $region12
      $region11: #{_ffn_pallas.1} parent=5 // pred_region
        %s191 = ssub.s32 %s14, 1
        // Predicated region
        $region13: #{_ffn_pallas.1} parent=11 // pred_check
          %p192 = pneg %p78
        $region14: #{_ffn_pallas.1} parent=11 // pred_check_branch
          %194 = sbr.rel (%p192) target = $region16
        $region15: #{_ffn_pallas.1} parent=11 // pred_region
          %p195 = scmp.lt.s32.totalorder %s24, 0
          %s196 = scalar_select %p195, %s24, 0
          %s197 = smul.addr %s196, 8
          %s198 = scalar_lea.vmem %s1, %s197
        $region16: #{_ffn_pallas.1} parent=11 // pred_fallthru
          _
        // Predicated region
        $region17: #{_ffn_pallas.1} parent=11 // pred_check
          %p199 = pneg %p104
        $region18: #{_ffn_pallas.1} parent=11 // pred_check_branch
          %201 = sbr.rel (%p199) target = $region20
        $region19: #{_ffn_pallas.1} parent=11 // pred_region
          %p202 = scmp.lt.s32.totalorder %s24, 0
          %s203 = scalar_select %p202, %s24, 0
          %s204 = scalar_lea.vmem %s2, %s203
        $region20: #{_ffn_pallas.1} parent=11 // pred_fallthru
          _
        // Predicated region
        $region21: #{_ffn_pallas.1} parent=11 // pred_check
          %p205 = pneg %p130
        $region22: #{_ffn_pallas.1} parent=11 // pred_check_branch
          %207 = sbr.rel (%p205) target = $region24
        $region23: #{_ffn_pallas.1} parent=11 // pred_region
          %s208 = smul.u32 16, %s24
          %p209 = scmp.lt.s32.totalorder %s208, 15
          %s210 = scalar_select %p209, %s208, 15
          %s211 = smul.addr %s210, 8
          %s212 = scalar_lea.vmem %s3, %s211
          %s213 = smul.u32 16, %s24
        $region24: #{_ffn_pallas.1} parent=11 // pred_fallthru
          _
        // Predicated region
        $region25: #{_ffn_pallas.1} parent=11 // pred_check
          %p214 = pneg %p151
        $region26: #{_ffn_pallas.1} parent=11 // pred_check_branch
          %216 = sbr.rel (%p214) target = $region28
        $region27: #{_ffn_pallas.1} parent=11 // pred_region
          _
        $region28: #{_ffn_pallas.1} parent=11 // pred_fallthru
          _
      $region12: #{_ffn_pallas.1} parent=5 // pred_fallthru
        _
      %p217 = scmp.lt.s32.totalorder %s14, 2
      // Predicated region
      $region29: #{_ffn_pallas.1} parent=5 // pred_check
        %p218 = pneg %p217
      $region30: #{_ffn_pallas.1} parent=5 // pred_check_branch
        %220 = sbr.rel (%p218) target = $region32
      $region31: #{_ffn_pallas.1} parent=5 // pred_region
        // Predicated region
        $region33: #{_ffn_pallas.1} parent=31 // pred_check
          %p221 = pneg %p46
        $region34: #{_ffn_pallas.1} parent=31 // pred_check_branch
          %223 = sbr.rel (%p221) target = $region36
        $region35: #{_ffn_pallas.1} parent=31 // pred_region
          %p224 = scmp.lt.s32.totalorder %s21, 1
          %s225 = scalar_select %p224, %s21, 1
          %s226 = smul.addr %s225, 8
          %s227 = scalar_lea.vmem %s0, %s226
        $region36: #{_ffn_pallas.1} parent=31 // pred_fallthru
          _
      $region32: #{_ffn_pallas.1} parent=5 // pred_fallthru
        _
      %p228 = scmp.le.s32.totalorder 1, %s14
      %p229 = scmp.lt.s32.totalorder %s14, 3
      %p230 = pnand %p228, %p229
      %p231 = pneg %p230
      // Predicated region
      $region37: #{_ffn_pallas.1} parent=5 // pred_check
        _
      $region38: #{_ffn_pallas.1} parent=5 // pred_check_branch
        %233 = sbr.rel (%p230) target = $region40
      $region39: #{_ffn_pallas.1} parent=5 // pred_region
        %s234 = ssub.s32 %s14, 1
        %p235 = scmp.lt.s32.totalorder %s23, 1
        %s236 = scalar_select %p235, %s23, 1
        %s237 = smul.addr %s236, 8
        %s238 = scalar_lea.vmem %s0, %s237
        %p239 = pneg %p52
        %p240 = pneg %p49
        %p241 = scmp.lt.s32.totalorder %s24, 0
        %s242 = scalar_select %p241, %s24, 0
        %s243 = smul.addr %s242, 8
        %s244 = scalar_lea.vmem %s1, %s243
        %p245 = pneg %p78
        %p246 = pneg %p75
        %p247 = scmp.lt.s32.totalorder %s24, 0
        %s248 = scalar_select %p247, %s24, 0
        %s249 = scalar_lea.vmem %s2, %s248
        %p250 = pneg %p104
        %p251 = pneg %p101
        %s252 = smul.u32 16, %s24
        %p253 = scmp.lt.s32.totalorder %s252, 15
        %s254 = scalar_select %p253, %s252, 15
        %s255 = smul.addr %s254, 8
        %s256 = scalar_lea.vmem %s3, %s255
        %p257 = pneg %p130
        %p258 = pneg %p127
        %p259 = pneg %p151
        %p260 = pneg %p148
        %p261 = pneg %p177
        %p262 = pneg %p174
        %s263 = sand.u32 %s164, 1
        %s264 = scalar_lea.sflag [#allocation3], %s263
        %s265 = sand.u32 %s164, 1
        %s266 = smul.addr %s265, 8
        %s267 = scalar_lea.vmem [#allocation2], %s266
        %p268 = scmp.lt.s32.totalorder %s23, 1
        %s269 = scalar_select %p268, %s23, 1
        %s270 = smul.addr %s269, 8
        %s271 = scalar_lea.vmem %s0, %s270
        %p272 = scmp.lt.s32.totalorder %s24, 0
        %s273 = scalar_select %p272, %s24, 0
        %s274 = smul.addr %s273, 8
        %s275 = scalar_lea.vmem %s1, %s274
        %p276 = scmp.lt.s32.totalorder %s24, 0
        %s277 = scalar_select %p276, %s24, 0
        %s278 = scalar_lea.vmem %s2, %s277
        %s279 = smul.u32 16, %s24
        %p280 = scmp.lt.s32.totalorder %s279, 15
        %s281 = scalar_select %p280, %s279, 15
        %s282 = smul.addr %s281, 8
        %s283 = scalar_lea.vmem %s3, %s282
        %s284 = smul.u32 16, %s24
        %p285 = scmp.eq.s32.totalorder %s24, 0
        // Predicated region
        $region41: #{_ffn_pallas.1} parent=39 // pred_check
          %p286 = pneg %p285
        $region42: #{_ffn_pallas.1} parent=39 // pred_check_branch
          %288 = sbr.rel (%p286) target = $region44
        $region43: #{_ffn_pallas.1} parent=39 // pred_region
          %v289 = vld [vmem:[%s4] sm:$0x1]
          %v291 = vperm.slane %v289, 0
          %vm293 = vcmask 261120
          %294 = vst.msk [vmem:[%s267] sm:$0xff] %vm293, %v291
        $region44: #{_ffn_pallas.1} parent=39 // pred_fallthru
          _
        %v295 = vld [vmem:[%s271] sm:$0xff]
        %v296 = vld [vmem:[%s275] sm:$0xff]
        %v297 = vld [vmem:[%s275 + $0x8] sm:$0xff]
        %v298 = vld [vmem:[%s275 + $0x10] sm:$0xff]
        %v299 = vld [vmem:[%s275 + $0x18] sm:$0xff]
        %v300 = vld [vmem:[%s278] sm:$0x1]
        %v302 = vperm.slane %v300, 0
        %vm304 = vcmask 261120
        %v306 = vsel %vm304, %v295, 0
        %308 = vmatpush.msra.mxu0 0.0
        %309 = vmatpush.msra.mxu0 0.0
        %310 = vmatpush.msra.mxu0 0.0
        %311 = vmatpush.msra.mxu0 0.0
        %312 = vmatpush.msra.mxu0 0.0
        %313 = vmatpush.msra.mxu0 0.0
        %314 = vmatpush.msra.mxu0 0.0
        %315 = vmatpush.msra.mxu0 0.0
        %316 = vmatpush.msra.mxu0 0.0
        %317 = vmatpush.msra.mxu0 0.0
        %318 = vmatpush.msra.mxu0 0.0
        %319 = vmatpush.msra.mxu0 0.0
        %320 = vmatpush.msra.mxu0 %v299
        %321 = vmatpush.msra.mxu0 %v298
        %322 = vmatpush.msra.mxu0 %v297
        %323 = vmatpush.msra.mxu0 %v296
        %324 = vmatmul.f32.gmra.mxu0 %v306
        %v325 = vpop.f32.mrf.mxu0
        %v326 = vadd.f32 %v302, %v325
        %327 = vdwg.mxu0
        %v328 = vmul.f32 %v326, 0.5
        %v329 = vmul.f32 %v326, 0.70710677
        %v330 = vmul.f32 %v329, %v329
        %v331 = vmin.f32 16.0, %v330
        %v332 = vmul.f32 %v331, 2.1237322e-06
        %v333 = vadd.f32 %v332, 0.00028619796
        %v334 = vmul.f32 %v331, %v333
        %v335 = vadd.f32 %v334, 0.0036580483
        %v336 = vmul.f32 %v331, %v335
        %v337 = vadd.f32 %v336, 0.05243302
        %v338 = vmul.f32 %v331, %v337
        %v339 = vadd.f32 %v338, 0.18741608
        %v340 = vmul.f32 %v331, %v339
        %v341 = vadd.f32 %v340, 1.1283791
        %v342 = vmul.f32 %v329, %v341
        %v343 = vmul.f32 %v331, 3.8918573e-05
        %v344 = vadd.f32 %v343, 0.001143296
        %v345 = vmul.f32 %v331, %v344
        %v346 = vadd.f32 %v345, 0.014752088
        %v347 = vmul.f32 %v331, %v346
        %v348 = vadd.f32 %v347, 0.112945676
        %v349 = vmul.f32 %v331, %v348
        %v350 = vadd.f32 %v349, 0.4994258
        %v351 = vmul.f32 %v331, %v350
        %v352 = vadd.f32 %v351, 1.0
        %v353 = vrcp.pop %v352
        %v354 = vmul.f32 %v352, %v353
        %v355 = vsub.f32 1.0, %v354
        %v356 = vmul.f32 %v353, %v355
        %v357 = vadd.f32 %v353, %v356
        %vm358 = vweird.f32 %v352
        %vm359 = vweird.f32 %v353
        %vm360 = vmor %vm358, %vm359
        %v361 = vsel %vm360, %v353, %v357
        %v362 = vand.u32 2147483647, %v352
        %vm363 = vcmp.eq.f32.partialorder %v362, 8.507059e+37
        %v364 = vand.u32 %v352, 2147483648
        %v365 = vor.u32 1.1754944e-38, %v364
        %v366 = vsel %vm363, %v365, %v361
        %v367 = vmul.f32 %v342, %v366
        %v368 = vmin.f32 %v367, 1.0
        %v369 = vmax.f32 %v368, -1.0
        %v370 = vadd.f32 %v369, 1.0
        %v371 = vmul.f32 %v328, %v370
        %v372 = vld [vmem:[%s267] sm:$0xff]
        %v373 = vld [vmem:[%s283] sm:$0xff]
        %v374 = vld [vmem:[%s283 + $0x8] sm:$0xff]
        %v375 = vld [vmem:[%s283 + $0x10] sm:$0xff]
        %v376 = vld [vmem:[%s283 + $0x18] sm:$0xff]
        %v377 = vld [vmem:[%s283 + $0x20] sm:$0xff]
        %v378 = vld [vmem:[%s283 + $0x28] sm:$0xff]
        %v379 = vld [vmem:[%s283 + $0x30] sm:$0xff]
        %v380 = vld [vmem:[%s283 + $0x38] sm:$0xff]
        %v381 = vld [vmem:[%s283 + $0x40] sm:$0xff]
        %v382 = vld [vmem:[%s283 + $0x48] sm:$0xff]
        %v383 = vld [vmem:[%s283 + $0x50] sm:$0xff]
        %v384 = vld [vmem:[%s283 + $0x58] sm:$0xff]
        %v385 = vld [vmem:[%s283 + $0x60] sm:$0xff]
        %v386 = vld [vmem:[%s283 + $0x68] sm:$0xff]
        %v387 = vld [vmem:[%s283 + $0x70] sm:$0xff]
        %v388 = vld [vmem:[%s283 + $0x78] sm:$0xff]
        %389 = vmatpush.msra.mxu0 %v388
        %390 = vmatpush.msra.mxu0 %v387
        %391 = vmatpush.msra.mxu0 %v386
        %392 = vmatpush.msra.mxu0 %v385
        %393 = vmatpush.msra.mxu0 %v384
        %394 = vmatpush.msra.mxu0 %v383
        %395 = vmatpush.msra.mxu0 %v382
        %396 = vmatpush.msra.mxu0 %v381
        %397 = vmatpush.msra.mxu0 %v380
        %398 = vmatpush.msra.mxu0 %v379
        %399 = vmatpush.msra.mxu0 %v378
        %400 = vmatpush.msra.mxu0 %v377
        %401 = vmatpush.msra.mxu0 %v376
        %402 = vmatpush.msra.mxu0 %v375
        %403 = vmatpush.msra.mxu0 %v374
        %404 = vmatpush.msra.mxu0 %v373
        %405 = vmatmul.f32.gmra.mxu0 %v371
        %v406 = vpop.f32.mrf.mxu0
        %v407 = vadd.f32 0.0, %v406
        %408 = vdwg.mxu0
        %v409 = vadd.f32 %v372, %v407
        %410 = vst.msk [vmem:[%s267] sm:$0xff] %vm304, %v409
        %s411 = sand.u32 %s164, 1
        %s412 = scalar_lea.sflag [#allocation3], %s411
        %s413 = sand.u32 %s164, 1
        %s414 = smul.addr %s413, 8
        %s415 = scalar_lea.vmem [#allocation2], %s414
        // Predicated region
        $region45: #{_ffn_pallas.1} parent=39 // pred_check
          %p416 = pneg %p174
        $region46: #{_ffn_pallas.1} parent=39 // pred_check_branch
          %418 = sbr.rel (%p416) target = $region48
        $region47: #{_ffn_pallas.1} parent=39 // pred_region
          %420 = vsyncadd %s412, 0
          %s421 = smul.addr %s23, 8
          %s422 = scalar_lea.hbm %s5, %s421
          %s424 = sshll.u32 %s415, 4
          %s425 = int_to_ptr.vmem [resolvable:$true] %s424
          %s426 = sshll.u32 %s422, 4
          %s427 = int_to_ptr.hbm [resolvable:$true] %s426
          %429 = dma.vmem_to_hbm [thread:$0]  %s425, 128, %s427, %s412
        $region48: #{_ffn_pallas.1} parent=39 // pred_fallthru
          _
      $region40: #{_ffn_pallas.1} parent=5 // pred_fallthru
        _
      %p430 = scmp.le.s32.totalorder 2, %s14
      // Predicated region
      $region49: #{_ffn_pallas.1} parent=5 // pred_check
        %p431 = pneg %p430
      $region50: #{_ffn_pallas.1} parent=5 // pred_check_branch
        %433 = sbr.rel (%p431) target = $region52
      $region51: #{_ffn_pallas.1} parent=5 // pred_region
        %s434 = ssub.s32 %s14, 2
        // Predicated region
        $region53: #{_ffn_pallas.1} parent=51 // pred_check
          %p435 = pneg %p180
        $region54: #{_ffn_pallas.1} parent=51 // pred_check_branch
          %437 = sbr.rel (%p435) target = $region56
        $region55: #{_ffn_pallas.1} parent=51 // pred_region
          %s438 = sand.u32 %s165, 1
          %s439 = scalar_lea.sflag [#allocation3], %s438
          %s440 = sand.u32 %s165, 1
          %s441 = smul.addr %s440, 8
          %s442 = scalar_lea.vmem [#allocation2], %s441
          %444 = dma.done %s439, 128
        $region56: #{_ffn_pallas.1} parent=51 // pred_fallthru
          _
      $region52: #{_ffn_pallas.1} parent=5 // pred_fallthru
        _
    $region6: #{_ffn_pallas.1} parent=1 // loop_footer
      %s18 = sadd.s32 1, %s14
    $region7: #{_ffn_pallas.1} parent=1 // loop_footer_branch
      %13 = sbr.rel target = $region3
    $region8: #{_ffn_pallas.1} parent=1 // loop_exit
      _
    %445 = vsyncpa [#allocation3], 1
    %s446 = scalar_lea.sflag [#allocation3], 1
    %447 = vsyncpa %s446, 1

</llo_original>
